<compile_context>
chip_gen: v7x
topology: tpu7x:2x2x1
jax: 0.10.0
libtpu: 0.0.40
codegen_flags: <defaults>
</compile_context>

<pallas_src>
import jax
import jax.numpy as jnp
from jax.experimental import pallas as pl
from jax.experimental.pallas import tpu as pltpu


def netloss_kernel(scores_ref, labels_ref, agg_ref, out_ref):
    scores = scores_ref[...]            # [2B, C]  (pre stacked on post along sublanes)
    lab = labels_ref[...]               # [B, C]
    B = lab.shape[0]

    # --- _cls_loss for pre & post fused into ONE log-softmax pass over [2B, C] ---
    # labels / (sum + 1e-10): approx reciprocal stays on the (otherwise idle) EUP slot.
    lab_norm = lab * pl.reciprocal(
        jnp.sum(lab, axis=1, keepdims=True) + 1e-10, approx=True)

    m = jnp.max(scores, axis=1, keepdims=True)                       # [2B, 1]
    z = scores - m
    lse = jnp.log(jnp.sum(jnp.exp(z), axis=1, keepdims=True))        # [2B, 1]
    log_softmax = z - lse                                            # [2B, C]

    ls_pre = log_softmax[:B]                                         # static sublane slice
    ls_post = log_softmax[B:]
    out_ref[0] = -jnp.mean(jnp.sum(lab_norm * ls_pre, axis=1, keepdims=True))
    out_ref[1] = -jnp.mean(jnp.sum(lab_norm * ls_post, axis=1, keepdims=True))

    # --- MSE(score_pre, score_post), mean over all elements ---
    diff = scores[:B] - scores[B:]
    out_ref[2] = jnp.mean(diff * diff)

    # --- agg-to-cls consistency: masked BCE over positive-class action/background scores ---
    p_act = agg_ref[0]                                               # [B, C] free leading-axis index
    p_bg = agg_ref[1]                                                # [B, C]
    mask = (lab == 1.0).astype(jnp.float32)                          # [B, C]
    k = jnp.sum(mask, axis=1, keepdims=True)                         # [B, 1] #positives per row
    # PyTorch BCELoss clamps each log term at -100 (handles p == 0 / 1 exactly).
    neg_log_p = -jnp.maximum(jnp.log(p_act), -100.0)
    neg_log_1mp = -jnp.maximum(jnp.log(1.0 - p_bg), -100.0)
    # A row with zero positive labels yields NaN, matching PyTorch's BCELoss on the
    # empty gather (0/0) — intentionally not guarded.
    per_row = (jnp.sum(mask * (neg_log_p + neg_log_1mp), axis=1, keepdims=True)
               * pl.reciprocal(2.0 * k, approx=True))                # [B, 1]
    out_ref[3] = jnp.mean(per_row)


@jax.jit
def net_loss(score_pre, score_post, labels, score_agg):
    """score_pre, score_post, labels: [B, C] f32; score_agg: [B, 2C] f32 (action | background).

    Returns (loss_pre, loss_post, loss_mse, loss_agg) scalars, matching NetLoss.forward.
    """
    B, C = labels.shape
    # Layout plumbing only (wrapper-side reshape/transpose, not compute hoisting):
    #   - one [2B, C] slab for both score tensors -> one input DMA, one log-softmax pass
    #   - [2, B, C] for score_agg so the kernel never slices mid-lane
    scores_cat = jnp.concatenate([score_pre, score_post], axis=0)
    agg = jnp.transpose(score_agg.reshape(B, 2, C), (1, 0, 2))

    out = pl.pallas_call(
        netloss_kernel,
        out_shape=jax.ShapeDtypeStruct((4,), jnp.float32),
        in_specs=[pl.BlockSpec(memory_space=pltpu.MemorySpace.VMEM)] * 3,
        out_specs=pl.BlockSpec(memory_space=pltpu.MemorySpace.SMEM),
    )(scores_cat, labels, agg)
    return out[0], out[1], out[2], out[3]


if __name__ == "__main__":
    B, C = 2, 8  # CLS_NUM = 8

    key = jax.random.PRNGKey(0)
    k1, k2, k3, k4 = jax.random.split(key, 4)

    score_pre = jax.random.normal(k1, (B, C), dtype=jnp.float32)
    score_post = jax.random.normal(k2, (B, C), dtype=jnp.float32)

    # multi-hot labels with at least one positive class per row (as in real data;
    # a zero-positive row would NaN exactly like the PyTorch reference)
    labels = (jax.random.uniform(k3, (B, C)) > 0.6).astype(jnp.float32)
    labels = labels.at[:, 0].set(1.0)

    # aggregated scores in (0, 1), shape [B, 2*C] (action | background)
    score_agg = jax.nn.sigmoid(jax.random.normal(k4, (B, 2 * C), dtype=jnp.float32))

    losses = net_loss(score_pre, score_post, labels, score_agg)
    jax.block_until_ready(losses)

    print("KERNEL_OK")
</pallas_src>

<mosaic_0001>
module attributes {stable_mosaic.version = 11 : i64} {
  func.func @netloss_kernel(%arg0: memref<4x8xf32, #tpu.memory_space<vmem>>, %arg1: memref<2x8xf32, #tpu.memory_space<vmem>>, %arg2: memref<2x2x8xf32, #tpu.memory_space<vmem>>, %arg3: memref<4xf32, #tpu.memory_space<smem>>) attributes {dimension_semantics = [], scalar_prefetch = 0 : i64, scratch_operands = 0 : i64, tpu.core_type = #tpu.core_type<tc>} {
    %c0 = arith.constant 0 : index
    %c0_0 = arith.constant 0 : index
    %0 = vector.load %arg0[%c0, %c0_0] : memref<4x8xf32, #tpu.memory_space<vmem>>, vector<4x8xf32>
    %c0_1 = arith.constant 0 : index
    %c0_2 = arith.constant 0 : index
    %1 = vector.load %arg1[%c0_1, %c0_2] : memref<2x8xf32, #tpu.memory_space<vmem>>, vector<2x8xf32>
    %cst = arith.constant dense<0.000000e+00> : vector<2xf32>
    %2 = vector.multi_reduction <add>, %1, %cst [1] : vector<2x8xf32> to vector<2xf32>
    %3 = vector.shape_cast %2 : vector<2xf32> to vector<2x1xf32>
    %cst_3 = arith.constant 1.000000e-10 : f32
    %4 = vector.broadcast %cst_3 : f32 to vector<2x1xf32>
    %5 = arith.addf %3, %4 : vector<2x1xf32>
    %6 = tpu.reciprocal %5 {approx = true} : vector<2x1xf32> -> vector<2x1xf32>
    %7 = vector.broadcast %6 : vector<2x1xf32> to vector<2x8xf32>
    %8 = arith.mulf %1, %7 : vector<2x8xf32>
    %cst_4 = arith.constant dense<0xFF800000> : vector<4xf32>
    %9 = vector.multi_reduction <maximumf>, %0, %cst_4 [1] : vector<4x8xf32> to vector<4xf32>
    %10 = vector.shape_cast %9 : vector<4xf32> to vector<4x1xf32>
    %11 = vector.broadcast %10 : vector<4x1xf32> to vector<4x8xf32>
    %12 = arith.subf %0, %11 : vector<4x8xf32>
    %13 = math.exp %12 : vector<4x8xf32>
    %cst_5 = arith.constant dense<0.000000e+00> : vector<4xf32>
    %14 = vector.multi_reduction <add>, %13, %cst_5 [1] : vector<4x8xf32> to vector<4xf32>
    %15 = vector.shape_cast %14 : vector<4xf32> to vector<4x1xf32>
    %16 = math.log %15 : vector<4x1xf32>
    %17 = vector.broadcast %16 : vector<4x1xf32> to vector<4x8xf32>
    %18 = arith.subf %12, %17 : vector<4x8xf32>
    %19 = vector.extract_strided_slice %18 {offsets = [0, 0], sizes = [2, 8], strides = [1, 1]} : vector<4x8xf32> to vector<2x8xf32>
    %20 = vector.extract_strided_slice %18 {offsets = [2, 0], sizes = [2, 8], strides = [1, 1]} : vector<4x8xf32> to vector<2x8xf32>
    %21 = arith.mulf %8, %19 : vector<2x8xf32>
    %cst_6 = arith.constant dense<0.000000e+00> : vector<2xf32>
    %22 = vector.multi_reduction <add>, %21, %cst_6 [1] : vector<2x8xf32> to vector<2xf32>
    %23 = vector.shape_cast %22 : vector<2xf32> to vector<2x1xf32>
    %24 = vector.shape_cast %23 : vector<2x1xf32> to vector<1x2x1xf32>
    %cst_7 = arith.constant dense<0.000000e+00> : vector<1xf32>
    %25 = vector.multi_reduction <add>, %24, %cst_7 [1, 2] : vector<1x2x1xf32> to vector<1xf32>
    %26 = vector.shape_cast %25 : vector<1xf32> to vector<1x1x1xf32>
    %27 = vector.extract %26[0, 0, 0] : f32 from vector<1x1x1xf32>
    %cst_8 = arith.constant 2.000000e+00 : f32
    %28 = arith.divf %27, %cst_8 : f32
    %cst_9 = arith.constant 0.000000e+00 : f32
    %29 = arith.subf %cst_9, %28 : f32
    %c0_10 = arith.constant 0 : index
    %30 = memref.load %arg3[%c0_10] : memref<4xf32, #tpu.memory_space<smem>>
    memref.store %29, %arg3[%c0_10] : memref<4xf32, #tpu.memory_space<smem>>
    %31 = arith.mulf %8, %20 : vector<2x8xf32>
    %cst_11 = arith.constant dense<0.000000e+00> : vector<2xf32>
    %32 = vector.multi_reduction <add>, %31, %cst_11 [1] : vector<2x8xf32> to vector<2xf32>
    %33 = vector.shape_cast %32 : vector<2xf32> to vector<2x1xf32>
    %34 = vector.shape_cast %33 : vector<2x1xf32> to vector<1x2x1xf32>
    %cst_12 = arith.constant dense<0.000000e+00> : vector<1xf32>
    %35 = vector.multi_reduction <add>, %34, %cst_12 [1, 2] : vector<1x2x1xf32> to vector<1xf32>
    %36 = vector.shape_cast %35 : vector<1xf32> to vector<1x1x1xf32>
    %37 = vector.extract %36[0, 0, 0] : f32 from vector<1x1x1xf32>
    %cst_13 = arith.constant 2.000000e+00 : f32
    %38 = arith.divf %37, %cst_13 : f32
    %cst_14 = arith.constant 0.000000e+00 : f32
    %39 = arith.subf %cst_14, %38 : f32
    %c1 = arith.constant 1 : index
    %40 = memref.load %arg3[%c1] : memref<4xf32, #tpu.memory_space<smem>>
    memref.store %39, %arg3[%c1] : memref<4xf32, #tpu.memory_space<smem>>
    %41 = vector.extract_strided_slice %0 {offsets = [0, 0], sizes = [2, 8], strides = [1, 1]} : vector<4x8xf32> to vector<2x8xf32>
    %42 = vector.extract_strided_slice %0 {offsets = [2, 0], sizes = [2, 8], strides = [1, 1]} : vector<4x8xf32> to vector<2x8xf32>
    %43 = arith.subf %41, %42 : vector<2x8xf32>
    %44 = arith.mulf %43, %43 : vector<2x8xf32>
    %45 = vector.shape_cast %44 : vector<2x8xf32> to vector<1x2x8xf32>
    %cst_15 = arith.constant dense<0.000000e+00> : vector<1xf32>
    %46 = vector.multi_reduction <add>, %45, %cst_15 [1, 2] : vector<1x2x8xf32> to vector<1xf32>
    %47 = vector.shape_cast %46 : vector<1xf32> to vector<1x1x1xf32>
    %48 = vector.extract %47[0, 0, 0] : f32 from vector<1x1x1xf32>
    %cst_16 = arith.constant 1.600000e+01 : f32
    %49 = arith.divf %48, %cst_16 : f32
    %c2 = arith.constant 2 : index
    %50 = memref.load %arg3[%c2] : memref<4xf32, #tpu.memory_space<smem>>
    memref.store %49, %arg3[%c2] : memref<4xf32, #tpu.memory_space<smem>>
    %c0_17 = arith.constant 0 : index
    %c0_18 = arith.constant 0 : index
    %c0_19 = arith.constant 0 : index
    %51 = vector.load %arg2[%c0_17, %c0_18, %c0_19] : memref<2x2x8xf32, #tpu.memory_space<vmem>>, vector<1x2x8xf32>
    %52 = vector.shape_cast %51 : vector<1x2x8xf32> to vector<2x8xf32>
    %c1_20 = arith.constant 1 : index
    %c0_21 = arith.constant 0 : index
    %c0_22 = arith.constant 0 : index
    %53 = vector.load %arg2[%c1_20, %c0_21, %c0_22] : memref<2x2x8xf32, #tpu.memory_space<vmem>>, vector<1x2x8xf32>
    %54 = vector.shape_cast %53 : vector<1x2x8xf32> to vector<2x8xf32>
    %cst_23 = arith.constant 1.000000e+00 : f32
    %55 = vector.broadcast %cst_23 : f32 to vector<2x8xf32>
    %56 = arith.cmpf oeq, %1, %55 : vector<2x8xf32>
    %57 = arith.extui %56 : vector<2x8xi1> to vector<2x8xi32>
    %58 = arith.sitofp %57 : vector<2x8xi32> to vector<2x8xf32>
    %cst_24 = arith.constant dense<0.000000e+00> : vector<2xf32>
    %59 = vector.multi_reduction <add>, %58, %cst_24 [1] : vector<2x8xf32> to vector<2xf32>
    %60 = vector.shape_cast %59 : vector<2xf32> to vector<2x1xf32>
    %61 = math.log %52 : vector<2x8xf32>
    %cst_25 = arith.constant -1.000000e+02 : f32
    %62 = vector.broadcast %cst_25 : f32 to vector<2x8xf32>
    %63 = arith.maximumf %61, %62 : vector<2x8xf32>
    %cst_26 = arith.constant 0.000000e+00 : f32
    %64 = vector.broadcast %cst_26 : f32 to vector<2x8xf32>
    %65 = arith.subf %64, %63 : vector<2x8xf32>
    %cst_27 = arith.constant 1.000000e+00 : f32
    %66 = vector.broadcast %cst_27 : f32 to vector<2x8xf32>
    %67 = arith.subf %66, %54 : vector<2x8xf32>
    %68 = math.log %67 : vector<2x8xf32>
    %cst_28 = arith.constant -1.000000e+02 : f32
    %69 = vector.broadcast %cst_28 : f32 to vector<2x8xf32>
    %70 = arith.maximumf %68, %69 : vector<2x8xf32>
    %cst_29 = arith.constant 0.000000e+00 : f32
    %71 = vector.broadcast %cst_29 : f32 to vector<2x8xf32>
    %72 = arith.subf %71, %70 : vector<2x8xf32>
    %73 = arith.addf %65, %72 : vector<2x8xf32>
    %74 = arith.mulf %58, %73 : vector<2x8xf32>
    %cst_30 = arith.constant dense<0.000000e+00> : vector<2xf32>
    %75 = vector.multi_reduction <add>, %74, %cst_30 [1] : vector<2x8xf32> to vector<2xf32>
    %76 = vector.shape_cast %75 : vector<2xf32> to vector<2x1xf32>
    %cst_31 = arith.constant 2.000000e+00 : f32
    %77 = vector.broadcast %cst_31 : f32 to vector<2x1xf32>
    %78 = arith.mulf %77, %60 : vector<2x1xf32>
    %79 = tpu.reciprocal %78 {approx = true} : vector<2x1xf32> -> vector<2x1xf32>
    %80 = arith.mulf %76, %79 : vector<2x1xf32>
    %81 = vector.shape_cast %80 : vector<2x1xf32> to vector<1x2x1xf32>
    %cst_32 = arith.constant dense<0.000000e+00> : vector<1xf32>
    %82 = vector.multi_reduction <add>, %81, %cst_32 [1, 2] : vector<1x2x1xf32> to vector<1xf32>
    %83 = vector.shape_cast %82 : vector<1xf32> to vector<1x1x1xf32>
    %84 = vector.extract %83[0, 0, 0] : f32 from vector<1x1x1xf32>
    %cst_33 = arith.constant 2.000000e+00 : f32
    %85 = arith.divf %84, %cst_33 : f32
    %c3 = arith.constant 3 : index
    %86 = memref.load %arg3[%c3] : memref<4xf32, #tpu.memory_space<smem>>
    memref.store %85, %arg3[%c3] : memref<4xf32, #tpu.memory_space<smem>>
    return
  }
}

</mosaic_0001>

<llo_original>
// kernel: net_loss.1
$region0: #{net_loss.1}
  #allocation0 [shape = 'u32[]', space=smem, size = 0x4, offset = 0x4, fixed_abs, tag = 'smem constant byte address 0x4 - core index']
  #allocation1 [shape = 'u32[144,128]{1,0:T(1,128)}', space=vmem, size = 0x12000, scoped, tag = 'internal scratch']
  %s0 = inlined_call_operand.vmem [shape: f32[4,8], index: 0, kind: input, shape index: {}]
  %s1 = inlined_call_operand.vmem [shape: f32[2,8], index: 1, kind: input, shape index: {}]
  %s2 = inlined_call_operand.vmem [shape: f32[2,2,8], index: 2, kind: input, shape index: {}]
  %s3 = inlined_call_operand.vmem [shape: f32[4], index: 3, kind: output, shape index: {}]
  %s4 = sld [smem:[#allocation0]]
  $region22: #{net_loss.1} parent=0
    _
  %s6 = ssub.s32 1, %s4
  %s7 = scalar_select 0, %s6, %s4
  $region1: #{net_loss.1} parent=0
    #allocation2 [shape = 'u8[512]{0}', space=smem, size = 0x200, scoped, tag = 'output window, operand 0, single buffered']
    #allocation3 [shape = 's32[1]{0}', space=sflag, size = 0x4, scoped, tag = 'scoped memory for net_loss.1']
    %8 = vsyncpa [#allocation3], 0
    // Predicated region
    $region2: #{net_loss.1} parent=1 // pred_check
      _
    $region3: #{net_loss.1} parent=1 // pred_check_branch
      %10 = sbr.rel (0) target = $region5
    $region4: #{net_loss.1} parent=1 // pred_region
      _
    $region5: #{net_loss.1} parent=1 // pred_fallthru
      _
    // Predicated region
    $region6: #{net_loss.1} parent=1 // pred_check
      _
    $region7: #{net_loss.1} parent=1 // pred_check_branch
      %12 = sbr.rel (0) target = $region9
    $region8: #{net_loss.1} parent=1 // pred_region
      _
    $region9: #{net_loss.1} parent=1 // pred_fallthru
      _
    // Predicated region
    $region10: #{net_loss.1} parent=1 // pred_check
      _
    $region11: #{net_loss.1} parent=1 // pred_check_branch
      %14 = sbr.rel (0) target = $region13
    $region12: #{net_loss.1} parent=1 // pred_region
      _
    $region13: #{net_loss.1} parent=1 // pred_fallthru
      _
    %v15 = vld [vmem:[%s0] sm:$0xf]
    %v16 = vld [vmem:[%s1] sm:$0x3]
    %vm17 = vcmask 58368
    %v18 = vsel %vm17, %v16, 0.0
    %19 = vadd.xlane.f32.xlu0 %v18
    %v20 = vpop.xlane.xlu0 %19
    %v21 = vadd.f32 %v20, 1e-10
    %v22 = vrcp.pop %v21
    %v23 = vmul.f32 %v16, %v22
    %vm24 = vcmask 60416
    %v25 = vsel %vm24, %v15, -inf
    %26 = vmax.xlane.f32.xlu0 %v25
    %v27 = vpop.xlane.xlu0 %26
    %v28 = vsub.f32 %v15, %v27
    %v29 = vmul.f32 %v28, 1.442695
    %v30 = vpow.pop %v29
    %v31 = vsel %vm24, %v30, 0.0
    %32 = vadd.xlane.f32.xlu0 %v31
    %v33 = vpop.xlane.xlu0 %32
    %v34 = vlog2.pop %v33
    %v35 = vmul.f32 %v34, 0.6931472
    %v36 = vsub.f32 %v28, %v35
    %v37 = vmul.f32 %v23, %v36
    %v38 = vsel %vm17, %v37, 0.0
    %39 = vadd.xlane.f32.xlu0 %v38
    %v40 = vpop.xlane.xlu0 %39
    %vm41 = vcmask 1024
    %v42 = vsel %vm41, %v40, 0.0
    %43 = vadd.xlane.f32.xlu0 %v42
    %v44 = vpop.xlane.xlu0 %43
    %v45 = vrot.slane %v44, 4
    %v46 = vadd.f32 %v44, %v45
    %v47 = vrot.slane %v46, 2
    %v48 = vadd.f32 %v46, %v47
    %v49 = vrot.slane %v48, 1
    %v50 = vadd.f32 %v48, %v49
    %s51 = vtos %v50
    %v52 = vrcp.pop 2.0
    %s53 = vtos %v52
    %s54 = smul.f32 %s51, %s53
    %s55 = ssub.f32 0.0, %s54
    %s56 = scalar_lea.smem [#allocation2], 0
    %57 = sst [smem:[%s56]] %s55
    %v59 = vrot.slane %v36, 2
    %v61 = vmul.f32 %v23, %v59
    %v62 = vsel %vm17, %v61, 0.0
    %63 = vadd.xlane.f32.xlu0 %v62
    %v64 = vpop.xlane.xlu0 %63
    %v65 = vsel %vm41, %v64, 0.0
    %66 = vadd.xlane.f32.xlu0 %v65
    %v67 = vpop.xlane.xlu0 %66
    %v68 = vrot.slane %v67, 4
    %v69 = vadd.f32 %v67, %v68
    %v70 = vrot.slane %v69, 2
    %v71 = vadd.f32 %v69, %v70
    %v72 = vrot.slane %v71, 1
    %v73 = vadd.f32 %v71, %v72
    %s74 = vtos %v73
    %v75 = vrcp.pop 2.0
    %s76 = vtos %v75
    %s77 = smul.f32 %s74, %s76
    %s78 = ssub.f32 0.0, %s77
    %s79 = scalar_lea.smem [#allocation2], 1
    %80 = sst [smem:[%s79]] %s78
    %v82 = vrot.slane %v15, 2
    %v84 = vsub.f32 %v15, %v82
    %v85 = vmul.f32 %v84, %v84
    %v86 = vsel %vm17, %v85, 0.0
    %87 = vadd.xlane.f32.xlu0 %v86
    %v88 = vpop.xlane.xlu0 %87
    %v89 = vrot.slane %v88, 4
    %v90 = vadd.f32 %v88, %v89
    %v91 = vrot.slane %v90, 2
    %v92 = vadd.f32 %v90, %v91
    %v93 = vrot.slane %v92, 1
    %v94 = vadd.f32 %v92, %v93
    %s95 = vtos %v94
    %v96 = vrcp.pop 16.0
    %s97 = vtos %v96
    %s98 = smul.f32 %s95, %s97
    %s99 = scalar_lea.smem [#allocation2], 2
    %100 = sst [smem:[%s99]] %s98
    %v101 = vld [vmem:[%s2] sm:$0x3]
    %s102 = scalar_lea.vmem %s2, 2
    %v103 = vld [vmem:[%s102] sm:$0x3]
    %vm104 = vcmp.eq.f32.partialorder %v16, 1.0
    %v105 = vsel %vm104, 1, 0
    %v106 = vcvt.s32.f32 %v105
    %v107 = vsel %vm17, %v106, 0.0
    %108 = vadd.xlane.f32.xlu0 %v107
    %v109 = vpop.xlane.xlu0 %108
    %v110 = vlog2.pop %v101
    %v111 = vmul.f32 %v110, 0.6931472
    %v112 = vmax.f32 %v111, -100.0
    %v113 = vsub.f32 0.0, %v112
    %v114 = vsub.f32 1.0, %v103
    %v115 = vlog2.pop %v114
    %v116 = vmul.f32 %v115, 0.6931472
    %v117 = vmax.f32 %v116, -100.0
    %v118 = vsub.f32 0.0, %v117
    %v119 = vadd.f32 %v113, %v118
    %v120 = vmul.f32 %v106, %v119
    %v121 = vsel %vm17, %v120, 0.0
    %122 = vadd.xlane.f32.xlu0 %v121
    %v123 = vpop.xlane.xlu0 %122
    %v124 = vmul.f32 %v109, 2.0
    %v125 = vrcp.pop %v124
    %v126 = vmul.f32 %v123, %v125
    %v127 = vsel %vm41, %v126, 0.0
    %128 = vadd.xlane.f32.xlu0 %v127
    %v129 = vpop.xlane.xlu0 %128
    %v130 = vrot.slane %v129, 4
    %v131 = vadd.f32 %v129, %v130
    %v132 = vrot.slane %v131, 2
    %v133 = vadd.f32 %v131, %v132
    %v134 = vrot.slane %v133, 1
    %v135 = vadd.f32 %v133, %v134
    %s136 = vtos %v135
    %v137 = vrcp.pop 2.0
    %s138 = vtos %v137
    %s139 = smul.f32 %s136, %s138
    %s140 = scalar_lea.smem [#allocation2], 3
    %141 = sst [smem:[%s140]] %s139
    // Predicated region
    $region14: #{net_loss.1} parent=1 // pred_check
      _
    $region15: #{net_loss.1} parent=1 // pred_check_branch
      %143 = sbr.rel (0) target = $region17
    $region16: #{net_loss.1} parent=1 // pred_region
      %s145 = ssub.s32 16, 16
      %146 = vsyncadd [#allocation3], %s145
      %s148 = sshll.u32 %s3, 4
      %s149 = int_to_ptr.vmem [resolvable:$true] %s148
      %151 = dma.smem_to_vmem [#allocation2], 16, %s149, [#allocation3]
    $region17: #{net_loss.1} parent=1 // pred_fallthru
      _
    // Predicated region
    $region18: #{net_loss.1} parent=1 // pred_check
      _
    $region19: #{net_loss.1} parent=1 // pred_check_branch
      %153 = sbr.rel (0) target = $region21
    $region20: #{net_loss.1} parent=1 // pred_region
      %154 = dma.done [#allocation3], 16
    $region21: #{net_loss.1} parent=1 // pred_fallthru
      _
    %155 = sfence
    %156 = vsyncpa [#allocation3], 1

</llo_original>
